<compile_context>
chip_gen: v5e
topology: v5e:2x2
jax: 0.10.0
libtpu: 0.0.40
codegen_flags: <defaults>
</compile_context>

<pallas_src>
import functools

import jax
import jax.numpy as jnp
from jax.experimental import pallas as pl
from jax.experimental.pallas import tpu as pltpu

LAYER_CONFIG = [(32, 3, 1), (64, 3, 2), ['B', 1], (128, 3, 2), ['B', 2],
                (256, 3, 2), ['B', 8], (512, 3, 2), ['B', 8], (1024, 3, 2),
                ['B', 4], (512, 1, 1), (1024, 3, 1), 'S', (256, 1, 1), 'U',
                (256, 1, 1), (512, 3, 1), 'S', (128, 1, 1), 'U', (128, 1, 1),
                (256, 3, 1), 'S']

NEG_SLOPE = 0.1      # LeakyReLU(0.1)
LANE = 128
MAX_TM = 256         # M tile cap (M is small/medium for every layer)
MAX_TN = 512         # N tile cap (keeps >=2 N-blocks on 1024-ch layers)
VMEM_LIMIT_BYTES = 48 << 20   # safe on v5e/v6e (128 MiB) and v7x (64 MiB)


def _round_up(x, m):
    return (x + m - 1) // m * m


# ---------------------------------------------------------------------------
# Pallas kernel: single-pass (full-K) matmul + shift + optional LeakyReLU
# ---------------------------------------------------------------------------
def _fused_matmul_kernel(x_ref, w_ref, shift_ref, o_ref, *, apply_act):
    # bf16 x bf16 -> f32 accumulation on the MXU; epilogue in f32 on the VPU.
    acc = jnp.dot(x_ref[...], w_ref[...], preferred_element_type=jnp.float32)
    y = acc + shift_ref[...]
    if apply_act:
        y = jnp.where(y > 0, y, NEG_SLOPE * y)
    o_ref[...] = y.astype(o_ref.dtype)


def fused_matmul(x, w_padded, shift_padded, *, apply_act, n_out, out_dtype):
    """act((x @ W') + shift).

    x:            (M, K)  any float dtype (cast to bf16 here)
    w_padded:     (Kp, Np) bf16, pre-padded/reshaped, BN scale pre-folded
    shift_padded: (1, Np)  f32
    Returns (M, n_out) in out_dtype.
    """
    M, K = x.shape
    Kp, Np = w_padded.shape
    assert Kp % LANE == 0 and Np % LANE == 0 and K <= Kp and n_out <= Np

    # Adaptive M tiling: tiny layers get tiny tiles instead of 128-padding.
    Mp0 = _round_up(M, 8)
    if Mp0 <= MAX_TM:
        TM, Mp = Mp0, Mp0
    else:
        TM, Mp = MAX_TM, _round_up(M, MAX_TM)
    TN = min(Np, MAX_TN)          # Np is a multiple of TN by construction.
    assert Np % TN == 0

    xp = jnp.pad(x.astype(jnp.bfloat16), ((0, Mp - M), (0, Kp - K)))

    grid = (Mp // TM, Np // TN)   # no K axis: TK == full padded K
    out = pl.pallas_call(
        functools.partial(_fused_matmul_kernel, apply_act=apply_act),
        out_shape=jax.ShapeDtypeStruct((Mp, Np), out_dtype),
        grid_spec=pltpu.PrefetchScalarGridSpec(
            num_scalar_prefetch=0,
            grid=grid,
            in_specs=[
                pl.BlockSpec((TM, Kp), lambda i, j: (i, 0)),
                pl.BlockSpec((Kp, TN), lambda i, j: (0, j)),
                pl.BlockSpec((1, TN), lambda i, j: (0, j)),
            ],
            out_specs=pl.BlockSpec((TM, TN), lambda i, j: (i, j)),
        ),
        compiler_params=pltpu.CompilerParams(
            dimension_semantics=("parallel", "parallel"),
            vmem_limit_bytes=VMEM_LIMIT_BYTES),
    )(xp, w_padded, shift_padded)
    return out[:M, :n_out]


# ---------------------------------------------------------------------------
# Conv block = im2col (fused into the per-layer jit) + Pallas matmul
# ---------------------------------------------------------------------------
def _im2col(x, k, stride, pad):
    """x: (N,H,W,C) -> patches (N,Hout,Wout,k*k*C)."""
    N, H, W, C = x.shape
    if k == 1 and pad == 0:
        # 1x1 conv: patches are just (strided) pixels, no stacking needed.
        xs = x[:, ::stride, ::stride, :]
        return xs, xs.shape[1], xs.shape[2]
    if pad:
        x = jnp.pad(x, ((0, 0), (pad, pad), (pad, pad), (0, 0)))
    Hp, Wp = H + 2 * pad, W + 2 * pad
    Hout = (Hp - k) // stride + 1
    Wout = (Wp - k) // stride + 1
    cols = []
    for kh in range(k):
        for kw in range(k):
            cols.append(x[:, kh:kh + (Hout - 1) * stride + 1:stride,
                           kw:kw + (Wout - 1) * stride + 1:stride, :])
    p = jnp.stack(cols, axis=3)  # (N, Hout, Wout, k*k, C)
    return p.reshape(N, Hout, Wout, k * k * C), Hout, Wout


@functools.partial(
    jax.jit,
    static_argnames=("k", "stride", "pad", "act", "cout", "out_dtype"))
def _cnn_block_impl(x, weight, shift, *, k, stride, pad, act, cout, out_dtype):
    patches, Hout, Wout = _im2col(x, k, stride, pad)
    B = x.shape[0]
    y = fused_matmul(patches.reshape(B * Hout * Wout, -1), weight, shift,
                     apply_act=act, n_out=cout, out_dtype=out_dtype)
    return y.reshape(B, Hout, Wout, cout)


def cnn_block(x, p, out_dtype=jnp.bfloat16):
    return _cnn_block_impl(x, p['weight'], p['shift'],
                           k=p['k'], stride=p['stride'], pad=p['pad'],
                           act=p['act'], cout=p['cout'], out_dtype=out_dtype)


# ---------------------------------------------------------------------------
# Deterministic parameter construction (mirrors YOLOv3._create_model_layers)
# ---------------------------------------------------------------------------
def _init_cnn_block(key, cin, cout, k, stride, bn=True):
    pad = 1 if k == 3 else 0
    kw_key, g_key, b_key, m_key, v_key = jax.random.split(key, 5)
    fan_in = k * k * cin
    w = jax.random.normal(kw_key, (k, k, cin, cout), jnp.float32) * jnp.sqrt(
        2.0 / fan_in)
    if bn:
        gamma = 1.0 + 0.1 * jax.random.normal(g_key, (cout,), jnp.float32)
        beta = 0.1 * jax.random.normal(b_key, (cout,), jnp.float32)
        mean = 0.1 * jax.random.normal(m_key, (cout,), jnp.float32)
        var = 1.0 + 0.1 * jax.random.uniform(v_key, (cout,), jnp.float32)
        scale = gamma / jnp.sqrt(var + 1e-5)
        shift = beta - mean * scale
        act = True
    else:  # conv with bias, no BN, no activation (detection-head output conv)
        bias = 0.1 * jax.random.normal(b_key, (cout,), jnp.float32)
        scale = jnp.ones((cout,), jnp.float32)
        shift = bias
        act = False

    # Fold BN scale into weights; pre-pad/pre-reshape once, store bf16 weights.
    K = k * k * cin
    Kp = _round_up(K, LANE)
    Np0 = _round_up(cout, LANE)
    Np = Np0 if Np0 <= MAX_TN else _round_up(Np0, MAX_TN)
    w_folded = (w * scale).reshape(K, cout)
    w_padded = jnp.pad(w_folded, ((0, Kp - K), (0, Np - cout))).astype(
        jnp.bfloat16)
    shift_padded = jnp.pad(shift.reshape(1, cout),
                           ((0, 0), (0, Np - cout))).astype(jnp.float32)

    return dict(weight=w_padded, shift=shift_padded, k=k, stride=stride,
                pad=pad, act=act, cout=cout)


def build_yolov3(key, in_channels=3, num_classes=20):
    layers = []
    cin = in_channels

    def next_key():
        nonlocal key
        key, sub = jax.random.split(key)
        return sub

    for block in LAYER_CONFIG:
        if isinstance(block, tuple):
            cout, k, stride = block
            layers.append(('cnn', _init_cnn_block(next_key(), cin, cout, k, stride)))
            cin = cout
        elif isinstance(block, list):
            nb = block[1]
            blocks = []
            for _ in range(nb):
                p1 = _init_cnn_block(next_key(), cin, cin // 2, 1, 1)
                p2 = _init_cnn_block(next_key(), cin // 2, cin, 3, 1)
                blocks.append((p1, p2))
            layers.append(('residual', dict(use_residual=True, num_blocks=nb,
                                            blocks=blocks)))
        elif block == 'S':
            p1 = _init_cnn_block(next_key(), cin, cin // 2, 1, 1)
            p2 = _init_cnn_block(next_key(), cin // 2, cin, 3, 1)
            layers.append(('residual', dict(use_residual=False, num_blocks=1,
                                            blocks=[(p1, p2)])))
            layers.append(('cnn', _init_cnn_block(next_key(), cin, cin // 2, 1, 1)))
            hcin = cin // 2
            h1 = _init_cnn_block(next_key(), hcin, hcin * 2, 3, 1)
            h2 = _init_cnn_block(next_key(), hcin * 2, (num_classes + 5) * 3, 1, 1,
                                 bn=False)
            layers.append(('scale_pred', dict(blocks=(h1, h2),
                                              num_classes=num_classes, anchors=3)))
            cin = cin // 2
        elif block == 'U':
            layers.append(('upsample', None))
            cin = cin * 3
    return layers


# ---------------------------------------------------------------------------
# Forward pass (mirrors YOLOv3.forward)
# ---------------------------------------------------------------------------
def yolov3_forward(layers, x_nchw):
    # NCHW -> NHWC, bf16 activations end-to-end (f32 accumulation inside kernel)
    x = jnp.transpose(x_nchw, (0, 2, 3, 1)).astype(jnp.bfloat16)
    predictions = []
    routes = []
    for kind, p in layers:
        if kind == 'scale_pred':
            h = cnn_block(x, p['blocks'][0])
            h = cnn_block(h, p['blocks'][1], out_dtype=jnp.float32)
            B, H, W, _ = h.shape
            h = h.reshape(B, H, W, p['anchors'], p['num_classes'] + 5)
            predictions.append(jnp.transpose(h, (0, 3, 1, 2, 4)))  # (B,3,H,W,nc+5)
            continue  # x is NOT updated by the prediction head
        if kind == 'cnn':
            x = cnn_block(x, p)
        elif kind == 'residual':
            for (p1, p2) in p['blocks']:
                y = cnn_block(cnn_block(x, p1), p2)
                x = x + y if p['use_residual'] else y
            if p['num_blocks'] == 8:
                routes.append(x)
        elif kind == 'upsample':
            x = jnp.repeat(jnp.repeat(x, 2, axis=1), 2, axis=2)  # nearest, 2x
            x = jnp.concatenate([x, routes[-1]], axis=-1)         # cat on channels
            routes.pop()
    return predictions


if __name__ == "__main__":
    key = jax.random.PRNGKey(0)
    pkey, xkey = jax.random.split(key)

    num_classes = 20
    layers = build_yolov3(pkey, in_channels=3, num_classes=num_classes)

    # PyTorch-convention NCHW input; 32x32 is the smallest spatial size the
    # /32-stride backbone supports.
    x = jax.random.normal(xkey, (2, 3, 32, 32), jnp.float32)

    preds = yolov3_forward(layers, x)
    preds = jax.block_until_ready(preds)

    expected = [(2, 3, 1, 1, num_classes + 5),
                (2, 3, 2, 2, num_classes + 5),
                (2, 3, 4, 4, num_classes + 5)]
    assert [tuple(p.shape) for p in preds] == expected, [p.shape for p in preds]
    assert all(bool(jnp.all(jnp.isfinite(p))) for p in preds)

    print("KERNEL_OK")
</pallas_src>

<mosaic_0001>
module attributes {stable_mosaic.version = 11 : i64} {
  func.func @_fused_matmul_kernel(%arg0: i32, %arg1: i32, %arg2: memref<256x128xbf16, #tpu.memory_space<vmem>>, %arg3: memref<128x128xbf16, #tpu.memory_space<vmem>>, %arg4: memref<1x128xf32, #tpu.memory_space<vmem>>, %arg5: memref<256x128xbf16, #tpu.memory_space<vmem>>) attributes {dimension_semantics = [#tpu.dimension_semantics<parallel>, #tpu.dimension_semantics<parallel>], iteration_bounds = array<i64: 8, 1>, scalar_prefetch = 0 : i64, scratch_operands = 0 : i64, tpu.core_type = #tpu.core_type<tc>, window_params = [{transform_indices = @transform_0, window_bounds = array<i64: 256, 128>}, {transform_indices = @transform_1, window_bounds = array<i64: 128, 128>}, {transform_indices = @transform_2, window_bounds = array<i64: 1, 128>}, {transform_indices = @transform_3, window_bounds = array<i64: 256, 128>}]} {
    %c0 = arith.constant 0 : index
    %c0_0 = arith.constant 0 : index
    %0 = vector.load %arg2[%c0, %c0_0] : memref<256x128xbf16, #tpu.memory_space<vmem>>, vector<256x128xbf16>
    %c0_1 = arith.constant 0 : index
    %c0_2 = arith.constant 0 : index
    %1 = vector.load %arg3[%c0_1, %c0_2] : memref<128x128xbf16, #tpu.memory_space<vmem>>, vector<128x128xbf16>
    %cst = arith.constant dense<0.000000e+00> : vector<256x128xf32>
    %2 = tpu.matmul %0, %1, %cst {dimension_numbers = #tpu.dot_dimension_numbers<[1], [0], [0], [1], [0, 0, 1, 1], [], []>} : vector<256x128xbf16>, vector<128x128xbf16>, vector<256x128xf32> -> vector<256x128xf32>
    %c0_3 = arith.constant 0 : index
    %c0_4 = arith.constant 0 : index
    %3 = vector.load %arg4[%c0_3, %c0_4] : memref<1x128xf32, #tpu.memory_space<vmem>>, vector<1x128xf32>
    %4 = vector.broadcast %3 : vector<1x128xf32> to vector<256x128xf32>
    %5 = arith.addf %2, %4 : vector<256x128xf32>
    %cst_5 = arith.constant 0.000000e+00 : f32
    %6 = vector.broadcast %cst_5 : f32 to vector<256x128xf32>
    %7 = arith.cmpf ogt, %5, %6 : vector<256x128xf32>
    %cst_6 = arith.constant 1.000000e-01 : f32
    %8 = vector.broadcast %cst_6 : f32 to vector<256x128xf32>
    %9 = arith.mulf %8, %5 : vector<256x128xf32>
    %10 = arith.select %7, %5, %9 : vector<256x128xi1>, vector<256x128xf32>
    %11 = arith.truncf %10 : vector<256x128xf32> to vector<256x128xbf16>
    %c0_7 = arith.constant 0 : index
    %c0_8 = arith.constant 0 : index
    %12 = vector.load %arg5[%c0_7, %c0_8] : memref<256x128xbf16, #tpu.memory_space<vmem>>, vector<256x128xbf16>
    tpu.vector_store %arg5[%c0_7, %c0_8], %11 {strides = array<i32>} : memref<256x128xbf16, #tpu.memory_space<vmem>>, vector<256x128xbf16>,
    return
  }
  func.func @transform_0(%arg0: i32, %arg1: i32) -> (i32, i32) {
    %c0_i32 = arith.constant 0 : i32
    %c0_i32_0 = arith.constant 0 : i32
    return %arg0, %c0_i32 : i32, i32
  }
  func.func @transform_1(%arg0: i32, %arg1: i32) -> (i32, i32) {
    %c0_i32 = arith.constant 0 : i32
    %c0_i32_0 = arith.constant 0 : i32
    return %c0_i32, %arg1 : i32, i32
  }
  func.func @transform_2(%arg0: i32, %arg1: i32) -> (i32, i32) {
    %c0_i32 = arith.constant 0 : i32
    %c0_i32_0 = arith.constant 0 : i32
    return %c0_i32, %arg1 : i32, i32
  }
  func.func @transform_3(%arg0: i32, %arg1: i32) -> (i32, i32) {
    %c0_i32 = arith.constant 0 : i32
    return %arg0, %arg1 : i32, i32
  }
}

</mosaic_0001>

<llo_original>
// kernel: _cnn_block_impl.1
$region0: #{_cnn_block_impl.1}
  #allocation0 [shape = 'u32[]', space=smem, size = 0x4, offset = 0x4, fixed_abs, tag = 'smem constant byte address 0x4 - core index']
  #allocation1 [shape = 'u32[72,128]{1,0:T(1,128)}', space=vmem, size = 0x9000, scoped, tag = 'internal scratch']
  %s0 = inlined_call_operand.vmem [shape: bf16[2048,128], index: 0, kind: input, shape index: {}]
  %s1 = inlined_call_operand.vmem [shape: bf16[128,128], index: 1, kind: input, shape index: {}]
  %s2 = inlined_call_operand.vmem [shape: f32[1,128], index: 2, kind: input, shape index: {}]
  %s3 = inlined_call_operand.hbm [shape: bf16[2048,128], index: 3, kind: output, shape index: {}]
  %s4 = sld [smem:[#allocation0]]
  $region45: #{_cnn_block_impl.1} parent=0
    _
  %s6 = ssub.s32 1, %s4
  %s7 = scalar_select 0, %s6, %s4
  $region1: #{_cnn_block_impl.1} parent=0
    #allocation2 [shape = 'u8[131072]{0}', space=vmem, size = 0x20000, scoped, tag = 'output window, operand 0']
    #allocation3 [shape = 's32[2]{0}', space=sflag, size = 0x8, scoped, tag = 'scoped memory for _cnn_block_impl.1']
    %8 = vsyncpa [#allocation3], 0
    %s9 = scalar_lea.sflag [#allocation3], 1
    %10 = vsyncpa %s9, 0
    loop: start=0, step=1, limit=10
    $region2: #{_cnn_block_impl.1} parent=1 // loop_pre_header
      _
    $region3: #{_cnn_block_impl.1} parent=1 // loop_header
      %s12 = sphi 0, %s16
      %p13 = scmp.ge.s32.totalorder %s12, 10
      %s19 = sphi 0, %s31
      %s20 = sphi 0, %s27
      %s21 = sphi 0, %s19
      %s22 = sphi 0, %s20
      %s23 = sphi 0, %s21
      %s24 = sphi 0, %s22
      %s34 = sphi 0, %s36
      %s37 = sphi 0, %s34
      %s38 = sphi 0, %s37
      %s54 = sphi 0, %s38
      %s60 = sphi 0, %s62
      %s63 = sphi 0, %s60
      %s64 = sphi 0, %s63
      %s80 = sphi 0, %s64
      %s86 = sphi 0, %s88
      %s89 = sphi 0, %s86
      %s90 = sphi 0, %s89
      %s106 = sphi 0, %s90
      %s114 = sphi 0, %s116
      %s117 = sphi 0, %s114
      %s118 = sphi 0, %s117
      %s134 = sphi 0, %s118
    $region4: #{_cnn_block_impl.1} parent=1 // loop_header_branch
      %15 = sbr.rel (%p13) target = $region8
    $region5: #{_cnn_block_impl.1} parent=1 // loop_body
      %s17 = ssub.s32 %s12, 1
      %s18 = ssub.s32 %s12, 2
      %s25 = sadd.s32 1, %s20
      %p26 = scmp.ge.s32.totalorder %s25, 1
      %s27 = scalar_select %p26, 0, %s25
      %s28 = sadd.s32 1, %s19
      %s29 = scalar_select %p26, %s28, %s19
      %p30 = scmp.ge.s32.totalorder %s29, 8
      %s31 = scalar_select %p30, 0, %s29
      %s32 = ssub.s32 %s19, %s31
      %p33 = scmp.eq.s32.totalorder %s32, 0
      %s35 = sadd.s32 %s34, 1
      %s36 = scalar_select %p33, %s34, %s35
      %p39 = pneg %p33
      %p40 = scmp.eq.s32.totalorder %s12, 7
      %p41 = por %p39, %p40
      %p42 = scmp.ne.s32.totalorder %s34, %s37
      %p43 = scmp.eq.s32.totalorder %s12, 0
      %p44 = por %p42, %p43
      %p45 = scmp.ne.s32.totalorder %s34, %s37
      %p46 = scmp.eq.s32.totalorder %s17, 7
      %p47 = por %p45, %p46
      %p48 = scmp.ne.s32.totalorder %s37, %s38
      %p49 = scmp.eq.s32.totalorder %s17, 0
      %p50 = por %p48, %p49
      %p51 = scmp.ne.s32.totalorder %s37, %s38
      %p52 = scmp.eq.s32.totalorder %s18, 7
      %p53 = por %p51, %p52
      %p55 = scmp.ne.s32.totalorder %s38, %s54
      %p56 = scmp.eq.s32.totalorder %s18, 0
      %p57 = por %p55, %p56
      %s58 = ssub.s32 %s20, %s27
      %p59 = scmp.eq.s32.totalorder %s58, 0
      %s61 = sadd.s32 %s60, 1
      %s62 = scalar_select %p59, %s60, %s61
      %p65 = pneg %p59
      %p66 = scmp.eq.s32.totalorder %s12, 7
      %p67 = por %p65, %p66
      %p68 = scmp.ne.s32.totalorder %s60, %s63
      %p69 = scmp.eq.s32.totalorder %s12, 0
      %p70 = por %p68, %p69
      %p71 = scmp.ne.s32.totalorder %s60, %s63
      %p72 = scmp.eq.s32.totalorder %s17, 7
      %p73 = por %p71, %p72
      %p74 = scmp.ne.s32.totalorder %s63, %s64
      %p75 = scmp.eq.s32.totalorder %s17, 0
      %p76 = por %p74, %p75
      %p77 = scmp.ne.s32.totalorder %s63, %s64
      %p78 = scmp.eq.s32.totalorder %s18, 7
      %p79 = por %p77, %p78
      %p81 = scmp.ne.s32.totalorder %s64, %s80
      %p82 = scmp.eq.s32.totalorder %s18, 0
      %p83 = por %p81, %p82
      %s84 = ssub.s32 %s20, %s27
      %p85 = scmp.eq.s32.totalorder %s84, 0
      %s87 = sadd.s32 %s86, 1
      %s88 = scalar_select %p85, %s86, %s87
      %p91 = pneg %p85
      %p92 = scmp.eq.s32.totalorder %s12, 7
      %p93 = por %p91, %p92
      %p94 = scmp.ne.s32.totalorder %s86, %s89
      %p95 = scmp.eq.s32.totalorder %s12, 0
      %p96 = por %p94, %p95
      %p97 = scmp.ne.s32.totalorder %s86, %s89
      %p98 = scmp.eq.s32.totalorder %s17, 7
      %p99 = por %p97, %p98
      %p100 = scmp.ne.s32.totalorder %s89, %s90
      %p101 = scmp.eq.s32.totalorder %s17, 0
      %p102 = por %p100, %p101
      %p103 = scmp.ne.s32.totalorder %s89, %s90
      %p104 = scmp.eq.s32.totalorder %s18, 7
      %p105 = por %p103, %p104
      %p107 = scmp.ne.s32.totalorder %s90, %s106
      %p108 = scmp.eq.s32.totalorder %s18, 0
      %p109 = por %p107, %p108
      %s110 = ssub.s32 %s19, %s31
      %s111 = ssub.s32 %s20, %s27
      %s112 = sor.u32 %s110, %s111
      %p113 = scmp.eq.s32.totalorder %s112, 0
      %s115 = sadd.s32 %s114, 1
      %s116 = scalar_select %p113, %s114, %s115
      %p119 = pneg %p113
      %p120 = scmp.eq.s32.totalorder %s12, 7
      %p121 = por %p119, %p120
      %p122 = scmp.ne.s32.totalorder %s114, %s117
      %p123 = scmp.eq.s32.totalorder %s12, 0
      %p124 = por %p122, %p123
      %p125 = scmp.ne.s32.totalorder %s114, %s117
      %p126 = scmp.eq.s32.totalorder %s17, 7
      %p127 = por %p125, %p126
      %p128 = scmp.ne.s32.totalorder %s117, %s118
      %p129 = scmp.eq.s32.totalorder %s17, 0
      %p130 = por %p128, %p129
      %p131 = scmp.ne.s32.totalorder %s117, %s118
      %p132 = scmp.eq.s32.totalorder %s18, 7
      %p133 = por %p131, %p132
      %p135 = scmp.ne.s32.totalorder %s118, %s134
      %p136 = scmp.eq.s32.totalorder %s18, 0
      %p137 = por %p135, %p136
      %p138 = scmp.le.s32.totalorder 1, %s12
      %p139 = scmp.lt.s32.totalorder %s12, 9
      %p140 = pnand %p138, %p139
      %p141 = pneg %p140
      // Predicated region
      $region9: #{_cnn_block_impl.1} parent=5 // pred_check
        _
      $region10: #{_cnn_block_impl.1} parent=5 // pred_check_branch
        %143 = sbr.rel (%p140) target = $region12
      $region11: #{_cnn_block_impl.1} parent=5 // pred_region
        %s144 = ssub.s32 %s12, 1
        // Predicated region
        $region13: #{_cnn_block_impl.1} parent=11 // pred_check
          %p145 = pneg %p76
        $region14: #{_cnn_block_impl.1} parent=11 // pred_check_branch
          %147 = sbr.rel (%p145) target = $region16
        $region15: #{_cnn_block_impl.1} parent=11 // pred_region
          %p148 = scmp.lt.s32.totalorder %s22, 0
          %s149 = scalar_select %p148, %s22, 0
          %s150 = smul.addr %s149, 4
          %s151 = scalar_lea.vmem %s1, %s150
        $region16: #{_cnn_block_impl.1} parent=11 // pred_fallthru
          _
        // Predicated region
        $region17: #{_cnn_block_impl.1} parent=11 // pred_check
          %p152 = pneg %p102
        $region18: #{_cnn_block_impl.1} parent=11 // pred_check_branch
          %154 = sbr.rel (%p152) target = $region20
        $region19: #{_cnn_block_impl.1} parent=11 // pred_region
          %p155 = scmp.lt.s32.totalorder %s22, 0
          %s156 = scalar_select %p155, %s22, 0
          %s157 = scalar_lea.vmem %s2, %s156
        $region20: #{_cnn_block_impl.1} parent=11 // pred_fallthru
          _
      $region12: #{_cnn_block_impl.1} parent=5 // pred_fallthru
        _
      %p158 = scmp.lt.s32.totalorder %s12, 8
      // Predicated region
      $region21: #{_cnn_block_impl.1} parent=5 // pred_check
        %p159 = pneg %p158
      $region22: #{_cnn_block_impl.1} parent=5 // pred_check_branch
        %161 = sbr.rel (%p159) target = $region24
      $region23: #{_cnn_block_impl.1} parent=5 // pred_region
        // Predicated region
        $region25: #{_cnn_block_impl.1} parent=23 // pred_check
          %p162 = pneg %p44
        $region26: #{_cnn_block_impl.1} parent=23 // pred_check_branch
          %164 = sbr.rel (%p162) target = $region28
        $region27: #{_cnn_block_impl.1} parent=23 // pred_region
          %s165 = smul.u32 32, %s19
          %p166 = scmp.lt.s32.totalorder %s165, 255
          %s167 = scalar_select %p166, %s165, 255
          %s168 = smul.addr %s167, 4
          %s169 = scalar_lea.vmem %s0, %s168
          %s170 = smul.u32 32, %s19
        $region28: #{_cnn_block_impl.1} parent=23 // pred_fallthru
          _
      $region24: #{_cnn_block_impl.1} parent=5 // pred_fallthru
        _
      %p171 = scmp.le.s32.totalorder 1, %s12
      %p172 = scmp.lt.s32.totalorder %s12, 9
      %p173 = pnand %p171, %p172
      %p174 = pneg %p173
      // Predicated region
      $region29: #{_cnn_block_impl.1} parent=5 // pred_check
        _
      $region30: #{_cnn_block_impl.1} parent=5 // pred_check_branch
        %176 = sbr.rel (%p173) target = $region32
      $region31: #{_cnn_block_impl.1} parent=5 // pred_region
        %s177 = ssub.s32 %s12, 1
        %s178 = smul.u32 32, %s21
        %p179 = scmp.lt.s32.totalorder %s178, 255
        %s180 = scalar_select %p179, %s178, 255
        %s181 = smul.addr %s180, 4
        %s182 = scalar_lea.vmem %s0, %s181
        %p183 = pneg %p50
        %p184 = pneg %p47
        %p185 = scmp.lt.s32.totalorder %s22, 0
        %s186 = scalar_select %p185, %s22, 0
        %s187 = smul.addr %s186, 4
        %s188 = scalar_lea.vmem %s1, %s187
        %p189 = pneg %p76
        %p190 = pneg %p73
        %p191 = scmp.lt.s32.totalorder %s22, 0
        %s192 = scalar_select %p191, %s22, 0
        %s193 = scalar_lea.vmem %s2, %s192
        %p194 = pneg %p102
        %p195 = pneg %p99
        %p196 = pneg %p130
        %p197 = pneg %p127
        %s198 = sand.u32 %s117, 1
        %s199 = scalar_lea.sflag [#allocation3], %s198
        %s200 = sand.u32 %s117, 1
        %s201 = smul.addr %s200, 128
        %s202 = scalar_lea.vmem [#allocation2], %s201
        %s203 = smul.u32 32, %s21
        %p204 = scmp.lt.s32.totalorder %s203, 255
        %s205 = scalar_select %p204, %s203, 255
        %s206 = smul.addr %s205, 4
        %s207 = scalar_lea.vmem %s0, %s206
        %s208 = smul.u32 32, %s21
        %p209 = scmp.lt.s32.totalorder %s22, 0
        %s210 = scalar_select %p209, %s22, 0
        %s211 = smul.addr %s210, 4
        %s212 = scalar_lea.vmem %s1, %s211
        %p213 = scmp.lt.s32.totalorder %s22, 0
        %s214 = scalar_select %p213, %s22, 0
        %s215 = scalar_lea.vmem %s2, %s214
        %s216 = smul.u32 32, %s21
        %v217 = vld [vmem:[%s207] sm:$0xf]
        %v218 = vld [vmem:[%s207 + $0x4] sm:$0xf]
        %v219 = vld [vmem:[%s207 + $0x8] sm:$0xf]
        %v220 = vld [vmem:[%s207 + $0xc] sm:$0xf]
        %v221 = vld [vmem:[%s207 + $0x10] sm:$0xf]
        %v222 = vld [vmem:[%s207 + $0x14] sm:$0xf]
        %v223 = vld [vmem:[%s207 + $0x18] sm:$0xf]
        %v224 = vld [vmem:[%s207 + $0x1c] sm:$0xf]
        %v225 = vld [vmem:[%s207 + $0x20] sm:$0xf]
        %v226 = vld [vmem:[%s207 + $0x24] sm:$0xf]
        %v227 = vld [vmem:[%s207 + $0x28] sm:$0xf]
        %v228 = vld [vmem:[%s207 + $0x2c] sm:$0xf]
        %v229 = vld [vmem:[%s207 + $0x30] sm:$0xf]
        %v230 = vld [vmem:[%s207 + $0x34] sm:$0xf]
        %v231 = vld [vmem:[%s207 + $0x38] sm:$0xf]
        %v232 = vld [vmem:[%s207 + $0x3c] sm:$0xf]
        %v233 = vld [vmem:[%s207 + $0x40] sm:$0xf]
        %v234 = vld [vmem:[%s207 + $0x44] sm:$0xf]
        %v235 = vld [vmem:[%s207 + $0x48] sm:$0xf]
        %v236 = vld [vmem:[%s207 + $0x4c] sm:$0xf]
        %v237 = vld [vmem:[%s207 + $0x50] sm:$0xf]
        %v238 = vld [vmem:[%s207 + $0x54] sm:$0xf]
        %v239 = vld [vmem:[%s207 + $0x58] sm:$0xf]
        %v240 = vld [vmem:[%s207 + $0x5c] sm:$0xf]
        %v241 = vld [vmem:[%s207 + $0x60] sm:$0xf]
        %v242 = vld [vmem:[%s207 + $0x64] sm:$0xf]
        %v243 = vld [vmem:[%s207 + $0x68] sm:$0xf]
        %v244 = vld [vmem:[%s207 + $0x6c] sm:$0xf]
        %v245 = vld [vmem:[%s207 + $0x70] sm:$0xf]
        %v246 = vld [vmem:[%s207 + $0x74] sm:$0xf]
        %v247 = vld [vmem:[%s207 + $0x78] sm:$0xf]
        %v248 = vld [vmem:[%s207 + $0x7c] sm:$0xf]
        %v249 = vld [vmem:[%s212] sm:$0xf]
        %v250 = vld [vmem:[%s212 + $0x4] sm:$0xf]
        %v251 = vld [vmem:[%s212 + $0x8] sm:$0xf]
        %v252 = vld [vmem:[%s212 + $0xc] sm:$0xf]
        %v253 = vld [vmem:[%s212 + $0x10] sm:$0xf]
        %v254 = vld [vmem:[%s212 + $0x14] sm:$0xf]
        %v255 = vld [vmem:[%s212 + $0x18] sm:$0xf]
        %v256 = vld [vmem:[%s212 + $0x1c] sm:$0xf]
        %v257 = vld [vmem:[%s212 + $0x20] sm:$0xf]
        %v258 = vld [vmem:[%s212 + $0x24] sm:$0xf]
        %v259 = vld [vmem:[%s212 + $0x28] sm:$0xf]
        %v260 = vld [vmem:[%s212 + $0x2c] sm:$0xf]
        %v261 = vld [vmem:[%s212 + $0x30] sm:$0xf]
        %v262 = vld [vmem:[%s212 + $0x34] sm:$0xf]
        %v263 = vld [vmem:[%s212 + $0x38] sm:$0xf]
        %v264 = vld [vmem:[%s212 + $0x3c] sm:$0xf]
        %v265 = vld [vmem:[%s215] sm:$0x1]
        %v267 = vperm.slane %v265, 0
        %v301 = vunpack.c.l.b16 %v217
        %v302 = vunpack.c.l.b16 %v218
        %v303 = vunpack.c.l.b16 %v219
        %v304 = vunpack.c.l.b16 %v220
        %v305 = vunpack.c.l.b16 %v221
        %v306 = vunpack.c.l.b16 %v222
        %v307 = vunpack.c.l.b16 %v223
        %v308 = vunpack.c.l.b16 %v224
        %v309 = vunpack.c.l.b16 %v225
        %v310 = vunpack.c.l.b16 %v226
        %v311 = vunpack.c.l.b16 %v227
        %v312 = vunpack.c.l.b16 %v228
        %v313 = vunpack.c.l.b16 %v229
        %v314 = vunpack.c.l.b16 %v230
        %v315 = vunpack.c.l.b16 %v231
        %v316 = vunpack.c.l.b16 %v232
        %v317 = vunpack.c.l.b16 %v233
        %v318 = vunpack.c.l.b16 %v234
        %v319 = vunpack.c.l.b16 %v235
        %v320 = vunpack.c.l.b16 %v236
        %v321 = vunpack.c.l.b16 %v237
        %v322 = vunpack.c.l.b16 %v238
        %v323 = vunpack.c.l.b16 %v239
        %v324 = vunpack.c.l.b16 %v240
        %v325 = vunpack.c.l.b16 %v241
        %v326 = vunpack.c.l.b16 %v242
        %v327 = vunpack.c.l.b16 %v243
        %v328 = vunpack.c.l.b16 %v244
        %v329 = vunpack.c.l.b16 %v245
        %v330 = vunpack.c.l.b16 %v246
        %v331 = vunpack.c.l.b16 %v247
        %v332 = vunpack.c.l.b16 %v248
        %v333 = vpack.c.b16 %v302, %v301
        %v334 = vpack.c.b16 %v304, %v303
        %v335 = vpack.c.b16 %v306, %v305
        %v336 = vpack.c.b16 %v308, %v307
        %v337 = vpack.c.b16 %v310, %v309
        %v338 = vpack.c.b16 %v312, %v311
        %v339 = vpack.c.b16 %v314, %v313
        %v340 = vpack.c.b16 %v316, %v315
        %v341 = vpack.c.b16 %v318, %v317
        %v342 = vpack.c.b16 %v320, %v319
        %v343 = vpack.c.b16 %v322, %v321
        %v344 = vpack.c.b16 %v324, %v323
        %v345 = vpack.c.b16 %v326, %v325
        %v346 = vpack.c.b16 %v328, %v327
        %v347 = vpack.c.b16 %v330, %v329
        %v348 = vpack.c.b16 %v332, %v331
        %v381 = vunpack.c.l.b16 %v249
        %v382 = vunpack.c.l.b16 %v250
        %v383 = vunpack.c.l.b16 %v251
        %v384 = vunpack.c.l.b16 %v252
        %v385 = vunpack.c.l.b16 %v253
        %v386 = vunpack.c.l.b16 %v254
        %v387 = vunpack.c.l.b16 %v255
        %v388 = vunpack.c.l.b16 %v256
        %v389 = vunpack.c.l.b16 %v257
        %v390 = vunpack.c.l.b16 %v258
        %v391 = vunpack.c.l.b16 %v259
        %v392 = vunpack.c.l.b16 %v260
        %v393 = vunpack.c.l.b16 %v261
        %v394 = vunpack.c.l.b16 %v262
        %v395 = vunpack.c.l.b16 %v263
        %v396 = vunpack.c.l.b16 %v264
        %v397 = vpack.c.b16 %v382, %v381
        %v398 = vpack.c.b16 %v384, %v383
        %v399 = vpack.c.b16 %v386, %v385
        %v400 = vpack.c.b16 %v388, %v387
        %v401 = vpack.c.b16 %v390, %v389
        %v402 = vpack.c.b16 %v392, %v391
        %v403 = vpack.c.b16 %v394, %v393
        %v404 = vpack.c.b16 %v396, %v395
        %413 = vmatpush.bf16.msra.mxu0 %v404
        %414 = vmatpush.bf16.msra.mxu0 %v403
        %415 = vmatpush.bf16.msra.mxu0 %v402
        %416 = vmatpush.bf16.msra.mxu0 %v401
        %417 = vmatpush.bf16.msra.mxu0 %v400
        %418 = vmatpush.bf16.msra.mxu0 %v399
        %419 = vmatpush.bf16.msra.mxu0 %v398
        %420 = vmatpush.bf16.msra.mxu0 %v397
        %421 = vmatmul.bf16.gmra.mxu0 %v333
        %v422 = vpop.f32.mrf.mxu0
        %v423 = vadd.f32 %v267, %v422
        %v424 = vpop.f32.mrf.mxu0
        %v425 = vadd.f32 %v267, %v424
        %426 = vmatmul.bf16.gmra.mxu0 %v334
        %v427 = vpop.f32.mrf.mxu0
        %v428 = vadd.f32 %v267, %v427
        %v429 = vpop.f32.mrf.mxu0
        %v430 = vadd.f32 %v267, %v429
        %431 = vmatmul.bf16.gmra.mxu0 %v335
        %v432 = vpop.f32.mrf.mxu0
        %v433 = vadd.f32 %v267, %v432
        %v434 = vpop.f32.mrf.mxu0
        %v435 = vadd.f32 %v267, %v434
        %436 = vmatmul.bf16.gmra.mxu0 %v336
        %v437 = vpop.f32.mrf.mxu0
        %v438 = vadd.f32 %v267, %v437
        %v439 = vpop.f32.mrf.mxu0
        %v440 = vadd.f32 %v267, %v439
        %441 = vmatmul.bf16.gmra.mxu0 %v337
        %v442 = vpop.f32.mrf.mxu0
        %v443 = vadd.f32 %v267, %v442
        %v444 = vpop.f32.mrf.mxu0
        %v445 = vadd.f32 %v267, %v444
        %446 = vmatmul.bf16.gmra.mxu0 %v338
        %v447 = vpop.f32.mrf.mxu0
        %v448 = vadd.f32 %v267, %v447
        %v449 = vpop.f32.mrf.mxu0
        %v450 = vadd.f32 %v267, %v449
        %451 = vmatmul.bf16.gmra.mxu0 %v339
        %v452 = vpop.f32.mrf.mxu0
        %v453 = vadd.f32 %v267, %v452
        %v454 = vpop.f32.mrf.mxu0
        %v455 = vadd.f32 %v267, %v454
        %456 = vmatmul.bf16.gmra.mxu0 %v340
        %v457 = vpop.f32.mrf.mxu0
        %v458 = vadd.f32 %v267, %v457
        %v459 = vpop.f32.mrf.mxu0
        %v460 = vadd.f32 %v267, %v459
        %461 = vmatmul.bf16.gmra.mxu0 %v341
        %v462 = vpop.f32.mrf.mxu0
        %v463 = vadd.f32 %v267, %v462
        %v464 = vpop.f32.mrf.mxu0
        %v465 = vadd.f32 %v267, %v464
        %466 = vmatmul.bf16.gmra.mxu0 %v342
        %v467 = vpop.f32.mrf.mxu0
        %v468 = vadd.f32 %v267, %v467
        %v469 = vpop.f32.mrf.mxu0
        %v470 = vadd.f32 %v267, %v469
        %471 = vmatmul.bf16.gmra.mxu0 %v343
        %v472 = vpop.f32.mrf.mxu0
        %v473 = vadd.f32 %v267, %v472
        %v474 = vpop.f32.mrf.mxu0
        %v475 = vadd.f32 %v267, %v474
        %476 = vmatmul.bf16.gmra.mxu0 %v344
        %v477 = vpop.f32.mrf.mxu0
        %v478 = vadd.f32 %v267, %v477
        %v479 = vpop.f32.mrf.mxu0
        %v480 = vadd.f32 %v267, %v479
        %481 = vmatmul.bf16.gmra.mxu0 %v345
        %v482 = vpop.f32.mrf.mxu0
        %v483 = vadd.f32 %v267, %v482
        %v484 = vpop.f32.mrf.mxu0
        %v485 = vadd.f32 %v267, %v484
        %486 = vmatmul.bf16.gmra.mxu0 %v346
        %v487 = vpop.f32.mrf.mxu0
        %v488 = vadd.f32 %v267, %v487
        %v489 = vpop.f32.mrf.mxu0
        %v490 = vadd.f32 %v267, %v489
        %491 = vmatmul.bf16.gmra.mxu0 %v347
        %v492 = vpop.f32.mrf.mxu0
        %v493 = vadd.f32 %v267, %v492
        %v494 = vpop.f32.mrf.mxu0
        %v495 = vadd.f32 %v267, %v494
        %496 = vmatmul.bf16.gmra.mxu0 %v348
        %v497 = vpop.f32.mrf.mxu0
        %v498 = vadd.f32 %v267, %v497
        %v499 = vpop.f32.mrf.mxu0
        %v500 = vadd.f32 %v267, %v499
        %501 = vdwg.mxu0
        %vm502 = vcmp.gt.f32.partialorder %v423, 0.0
        %vm503 = vcmp.gt.f32.partialorder %v425, 0.0
        %vm504 = vcmp.gt.f32.partialorder %v428, 0.0
        %vm505 = vcmp.gt.f32.partialorder %v430, 0.0
        %vm506 = vcmp.gt.f32.partialorder %v433, 0.0
        %vm507 = vcmp.gt.f32.partialorder %v435, 0.0
        %vm508 = vcmp.gt.f32.partialorder %v438, 0.0
        %vm509 = vcmp.gt.f32.partialorder %v440, 0.0
        %vm510 = vcmp.gt.f32.partialorder %v443, 0.0
        %vm511 = vcmp.gt.f32.partialorder %v445, 0.0
        %vm512 = vcmp.gt.f32.partialorder %v448, 0.0
        %vm513 = vcmp.gt.f32.partialorder %v450, 0.0
        %vm514 = vcmp.gt.f32.partialorder %v453, 0.0
        %vm515 = vcmp.gt.f32.partialorder %v455, 0.0
        %vm516 = vcmp.gt.f32.partialorder %v458, 0.0
        %vm517 = vcmp.gt.f32.partialorder %v460, 0.0
        %vm518 = vcmp.gt.f32.partialorder %v463, 0.0
        %vm519 = vcmp.gt.f32.partialorder %v465, 0.0
        %vm520 = vcmp.gt.f32.partialorder %v468, 0.0
        %vm521 = vcmp.gt.f32.partialorder %v470, 0.0
        %vm522 = vcmp.gt.f32.partialorder %v473, 0.0
        %vm523 = vcmp.gt.f32.partialorder %v475, 0.0
        %vm524 = vcmp.gt.f32.partialorder %v478, 0.0
        %vm525 = vcmp.gt.f32.partialorder %v480, 0.0
        %vm526 = vcmp.gt.f32.partialorder %v483, 0.0
        %vm527 = vcmp.gt.f32.partialorder %v485, 0.0
        %vm528 = vcmp.gt.f32.partialorder %v488, 0.0
        %vm529 = vcmp.gt.f32.partialorder %v490, 0.0
        %vm530 = vcmp.gt.f32.partialorder %v493, 0.0
        %vm531 = vcmp.gt.f32.partialorder %v495, 0.0
        %vm532 = vcmp.gt.f32.partialorder %v498, 0.0
        %vm533 = vcmp.gt.f32.partialorder %v500, 0.0
        %v534 = vmul.f32 %v423, 0.1
        %v535 = vmul.f32 %v425, 0.1
        %v536 = vmul.f32 %v428, 0.1
        %v537 = vmul.f32 %v430, 0.1
        %v538 = vmul.f32 %v433, 0.1
        %v539 = vmul.f32 %v435, 0.1
        %v540 = vmul.f32 %v438, 0.1
        %v541 = vmul.f32 %v440, 0.1
        %v542 = vmul.f32 %v443, 0.1
        %v543 = vmul.f32 %v445, 0.1
        %v544 = vmul.f32 %v448, 0.1
        %v545 = vmul.f32 %v450, 0.1
        %v546 = vmul.f32 %v453, 0.1
        %v547 = vmul.f32 %v455, 0.1
        %v548 = vmul.f32 %v458, 0.1
        %v549 = vmul.f32 %v460, 0.1
        %v550 = vmul.f32 %v463, 0.1
        %v551 = vmul.f32 %v465, 0.1
        %v552 = vmul.f32 %v468, 0.1
        %v553 = vmul.f32 %v470, 0.1
        %v554 = vmul.f32 %v473, 0.1
        %v555 = vmul.f32 %v475, 0.1
        %v556 = vmul.f32 %v478, 0.1
        %v557 = vmul.f32 %v480, 0.1
        %v558 = vmul.f32 %v483, 0.1
        %v559 = vmul.f32 %v485, 0.1
        %v560 = vmul.f32 %v488, 0.1
        %v561 = vmul.f32 %v490, 0.1
        %v562 = vmul.f32 %v493, 0.1
        %v563 = vmul.f32 %v495, 0.1
        %v564 = vmul.f32 %v498, 0.1
        %v565 = vmul.f32 %v500, 0.1
        %v566 = vsel %vm502, %v423, %v534
        %v567 = vsel %vm503, %v425, %v535
        %v568 = vsel %vm504, %v428, %v536
        %v569 = vsel %vm505, %v430, %v537
        %v570 = vsel %vm506, %v433, %v538
        %v571 = vsel %vm507, %v435, %v539
        %v572 = vsel %vm508, %v438, %v540
        %v573 = vsel %vm509, %v440, %v541
        %v574 = vsel %vm510, %v443, %v542
        %v575 = vsel %vm511, %v445, %v543
        %v576 = vsel %vm512, %v448, %v544
        %v577 = vsel %vm513, %v450, %v545
        %v578 = vsel %vm514, %v453, %v546
        %v579 = vsel %vm515, %v455, %v547
        %v580 = vsel %vm516, %v458, %v548
        %v581 = vsel %vm517, %v460, %v549
        %v582 = vsel %vm518, %v463, %v550
        %v583 = vsel %vm519, %v465, %v551
        %v584 = vsel %vm520, %v468, %v552
        %v585 = vsel %vm521, %v470, %v553
        %v586 = vsel %vm522, %v473, %v554
        %v587 = vsel %vm523, %v475, %v555
        %v588 = vsel %vm524, %v478, %v556
        %v589 = vsel %vm525, %v480, %v557
        %v590 = vsel %vm526, %v483, %v558
        %v591 = vsel %vm527, %v485, %v559
        %v592 = vsel %vm528, %v488, %v560
        %v593 = vsel %vm529, %v490, %v561
        %v594 = vsel %vm530, %v493, %v562
        %v595 = vsel %vm531, %v495, %v563
        %v596 = vsel %vm532, %v498, %v564
        %v597 = vsel %vm533, %v500, %v565
        %v598 = vpack.c.bf16 %v566, %v566
        %v599 = vpack.c.bf16 %v567, %v567
        %v600 = vpack.c.bf16 %v568, %v568
        %v601 = vpack.c.bf16 %v569, %v569
        %v602 = vpack.c.bf16 %v570, %v570
        %v603 = vpack.c.bf16 %v571, %v571
        %v604 = vpack.c.bf16 %v572, %v572
        %v605 = vpack.c.bf16 %v573, %v573
        %v606 = vpack.c.bf16 %v574, %v574
        %v607 = vpack.c.bf16 %v575, %v575
        %v608 = vpack.c.bf16 %v576, %v576
        %v609 = vpack.c.bf16 %v577, %v577
        %v610 = vpack.c.bf16 %v578, %v578
        %v611 = vpack.c.bf16 %v579, %v579
        %v612 = vpack.c.bf16 %v580, %v580
        %v613 = vpack.c.bf16 %v581, %v581
        %v614 = vpack.c.bf16 %v582, %v582
        %v615 = vpack.c.bf16 %v583, %v583
        %v616 = vpack.c.bf16 %v584, %v584
        %v617 = vpack.c.bf16 %v585, %v585
        %v618 = vpack.c.bf16 %v586, %v586
        %v619 = vpack.c.bf16 %v587, %v587
        %v620 = vpack.c.bf16 %v588, %v588
        %v621 = vpack.c.bf16 %v589, %v589
        %v622 = vpack.c.bf16 %v590, %v590
        %v623 = vpack.c.bf16 %v591, %v591
        %v624 = vpack.c.bf16 %v592, %v592
        %v625 = vpack.c.bf16 %v593, %v593
        %v626 = vpack.c.bf16 %v594, %v594
        %v627 = vpack.c.bf16 %v595, %v595
        %v628 = vpack.c.bf16 %v596, %v596
        %v629 = vpack.c.bf16 %v597, %v597
        %630 = vst [vmem:[%s202] sm:$0xf] %v598
        %631 = vst [vmem:[%s202 + $0x4] sm:$0xf] %v599
        %632 = vst [vmem:[%s202 + $0x8] sm:$0xf] %v600
        %633 = vst [vmem:[%s202 + $0xc] sm:$0xf] %v601
        %634 = vst [vmem:[%s202 + $0x10] sm:$0xf] %v602
        %635 = vst [vmem:[%s202 + $0x14] sm:$0xf] %v603
        %636 = vst [vmem:[%s202 + $0x18] sm:$0xf] %v604
        %637 = vst [vmem:[%s202 + $0x1c] sm:$0xf] %v605
        %638 = vst [vmem:[%s202 + $0x20] sm:$0xf] %v606
        %639 = vst [vmem:[%s202 + $0x24] sm:$0xf] %v607
        %640 = vst [vmem:[%s202 + $0x28] sm:$0xf] %v608
        %641 = vst [vmem:[%s202 + $0x2c] sm:$0xf] %v609
        %642 = vst [vmem:[%s202 + $0x30] sm:$0xf] %v610
        %643 = vst [vmem:[%s202 + $0x34] sm:$0xf] %v611
        %644 = vst [vmem:[%s202 + $0x38] sm:$0xf] %v612
        %645 = vst [vmem:[%s202 + $0x3c] sm:$0xf] %v613
        %646 = vst [vmem:[%s202 + $0x40] sm:$0xf] %v614
        %647 = vst [vmem:[%s202 + $0x44] sm:$0xf] %v615
        %648 = vst [vmem:[%s202 + $0x48] sm:$0xf] %v616
        %649 = vst [vmem:[%s202 + $0x4c] sm:$0xf] %v617
        %650 = vst [vmem:[%s202 + $0x50] sm:$0xf] %v618
        %651 = vst [vmem:[%s202 + $0x54] sm:$0xf] %v619
        %652 = vst [vmem:[%s202 + $0x58] sm:$0xf] %v620
        %653 = vst [vmem:[%s202 + $0x5c] sm:$0xf] %v621
        %654 = vst [vmem:[%s202 + $0x60] sm:$0xf] %v622
        %655 = vst [vmem:[%s202 + $0x64] sm:$0xf] %v623
        %656 = vst [vmem:[%s202 + $0x68] sm:$0xf] %v624
        %657 = vst [vmem:[%s202 + $0x6c] sm:$0xf] %v625
        %658 = vst [vmem:[%s202 + $0x70] sm:$0xf] %v626
        %659 = vst [vmem:[%s202 + $0x74] sm:$0xf] %v627
        %660 = vst [vmem:[%s202 + $0x78] sm:$0xf] %v628
        %661 = vst [vmem:[%s202 + $0x7c] sm:$0xf] %v629
        %s662 = sand.u32 %s117, 1
        %s663 = scalar_lea.sflag [#allocation3], %s662
        %s664 = sand.u32 %s117, 1
        %s665 = smul.addr %s664, 128
        %s666 = scalar_lea.vmem [#allocation2], %s665
        // Predicated region
        $region33: #{_cnn_block_impl.1} parent=31 // pred_check
          %p667 = pneg %p127
        $region34: #{_cnn_block_impl.1} parent=31 // pred_check_branch
          %669 = sbr.rel (%p667) target = $region36
        $region35: #{_cnn_block_impl.1} parent=31 // pred_region
          %s670 = smul.u32 32, %s21
          %672 = vsyncadd %s663, 0
          %s673 = sadd.s32 %s22, %s670
          %s674 = smul.addr %s673, 4
          %s675 = scalar_lea.hbm %s3, %s674
          %s676 = sshll.u32 %s666, 4
          %s677 = int_to_ptr.vmem [resolvable:$true] %s676
          %s678 = sshll.u32 %s675, 4
          %s679 = int_to_ptr.hbm [resolvable:$true] %s678
          %684 = dma.vmem_to_hbm [thread:$0]  %s677, 2048, %s679, %s663, 64, 64, 4
        $region36: #{_cnn_block_impl.1} parent=31 // pred_fallthru
          _
      $region32: #{_cnn_block_impl.1} parent=5 // pred_fallthru
        _
      %p685 = scmp.le.s32.totalorder 2, %s12
      // Predicated region
      $region37: #{_cnn_block_impl.1} parent=5 // pred_check
        %p686 = pneg %p685
      $region38: #{_cnn_block_impl.1} parent=5 // pred_check_branch
        %688 = sbr.rel (%p686) target = $region40
      $region39: #{_cnn_block_impl.1} parent=5 // pred_region
        %s689 = ssub.s32 %s12, 2
        // Predicated region
        $region41: #{_cnn_block_impl.1} parent=39 // pred_check
          %p690 = pneg %p133
        $region42: #{_cnn_block_impl.1} parent=39 // pred_check_branch
          %692 = sbr.rel (%p690) target = $region44
        $region43: #{_cnn_block_impl.1} parent=39 // pred_region
          %s693 = sand.u32 %s118, 1
          %s694 = scalar_lea.sflag [#allocation3], %s693
          %s695 = sand.u32 %s118, 1
          %s696 = smul.addr %s695, 128
          %s697 = scalar_lea.vmem [#allocation2], %s696
          %699 = dma.done %s694, 2048
        $region44: #{_cnn_block_impl.1} parent=39 // pred_fallthru
          _
      $region40: #{_cnn_block_impl.1} parent=5 // pred_fallthru
        _
    $region6: #{_cnn_block_impl.1} parent=1 // loop_footer
      %s16 = sadd.s32 1, %s12
    $region7: #{_cnn_block_impl.1} parent=1 // loop_footer_branch
      %11 = sbr.rel target = $region3
    $region8: #{_cnn_block_impl.1} parent=1 // loop_exit
      _
    %700 = vsyncpa [#allocation3], 1
    %s701 = scalar_lea.sflag [#allocation3], 1
    %702 = vsyncpa %s701, 1

</llo_original>
